<compile_context>
chip_gen: v7x
topology: tpu7x:2x2x1
jax: 0.10.0
libtpu: 0.0.40
codegen_flags: <defaults>
</compile_context>

<pallas_src>
import jax
import jax.numpy as jnp
from jax.experimental import pallas as pl
from jax.experimental.pallas import tpu as pltpu


def _round_up(n, m):
    return ((n + m - 1) // m) * m


def _make_ggm_kernel(Bt, C, Cp, P, HW, offs, matmul_dtype):
    off_spat, off_qr, off_ql, off_vl = offs
    inv_hw = 1.0 / float(HW)
    f32 = jnp.float32

    def _sigmoid(v):
        # exp routes to the EUP; exact reciprocal keeps the gates in [0, 1].
        return pl.reciprocal(1.0 + jnp.exp(-v), approx=False)

    def kernel(x_ref, map_ref, w_ref, o_ref):
        w = w_ref[...]                                               # (R, C) bf16

        def body(bt, carry):
            x = x_ref[bt]                                            # (C, HW) HBM dtype
            m = map_ref[bt].astype(f32)                              # (1, HW)
            xm = x if x.dtype == matmul_dtype else x.astype(matmul_dtype)

            # Single fused projection matmul: bf16 in, f32 accumulate.
            y = jnp.dot(w, xm, preferred_element_type=f32)           # (R, HW)
            spat = y[off_spat:off_spat + P]                          # (wup@wvr) @ x
            cm = y[off_qr:off_qr + 1]                                # wqr @ x
            g_x = y[off_ql:off_ql + Cp]                              # wql @ x
            th = y[off_vl:off_vl + Cp]                               # wvl @ x

            # ---------------- spatial_pool ----------------
            cm_e = jnp.exp(cm - jnp.max(cm, axis=1, keepdims=True))  # (1, HW)
            z_r = jnp.sum(cm_e, axis=1, keepdims=True)               # (1, 1)
            # deferred softmax normalization: ctx_up = spat @ softmax(cm)^T
            ctx_up = jnp.sum(spat * cm_e, axis=1, keepdims=True)     # (P, 1)
            ctx_up = ctx_up * pl.reciprocal(z_r, approx=False)
            mask_ch = _sigmoid(ctx_up)                               # (P, 1)

            # ---------------- channel_pool ----------------
            avg_x = jnp.sum(g_x, axis=1, keepdims=True) * inv_hw     # (Cp, 1)
            theta = th * _sigmoid(m)                                 # (Cp, HW)
            th_e = jnp.exp(theta - jnp.max(theta, axis=1, keepdims=True))
            z_l = jnp.sum(th_e, axis=1, keepdims=True)               # (Cp, 1)
            # deferred normalization: scale the (Cp,1) avg, not the (Cp,HW) tile.
            scaled = avg_x * pl.reciprocal(z_l, approx=False)        # (Cp, 1)
            ctx2 = jnp.sum(scaled * th_e, axis=0, keepdims=True)     # (1, HW)
            mask_sp = _sigmoid(ctx2)                                 # (1, HW)

            # P == C -> mask_ch broadcasts over HW, mask_sp over C.
            gate = mask_ch + mask_sp                                 # (C, HW)
            o_ref[bt] = (x.astype(f32) * gate).astype(o_ref.dtype)
            return carry

        # Small Bt: full unroll (ILP).  Large Bt: rolled loop so per-batch f32
        # intermediates never pile up across iterations (bounded live ranges).
        jax.lax.fori_loop(0, Bt, body, 0, unroll=(Bt <= 4))

    return kernel


def ggm_forward(x, mp, wqr, wvr, wup, wql, wvl, *,
                matmul_dtype=jnp.bfloat16, target_step_bytes=8 << 20):
    B, C, H, W = x.shape
    HW = H * W
    Cp = wvr.shape[0]
    P = wup.shape[0]
    assert P == C, "ggm requires planes == inplanes for the `x * mask_ch` broadcast"
    assert wqr.shape == (1, C) and wql.shape == (Cp, C) and wvl.shape == (Cp, C)
    assert wup.shape == (P, Cp)

    # Views only -- no pad / transpose / slice HBM passes around the kernel.
    x2 = x.reshape(B, C, HW)
    m2 = mp.reshape(B, 1, HW)

    # Stacked projection weight with 8-row-aligned segments:
    #   [ wup@wvr (P -> P8) ; wqr (1 -> 8) ; wql (Cp -> Cp8) ; wvl (Cp -> Cp8) ]
    f32 = jnp.float32
    P8, Cp8 = _round_up(P, 8), _round_up(Cp, 8)
    off_spat, off_qr = 0, P8
    off_ql, off_vl = P8 + 8, P8 + 8 + Cp8
    R = P8 + 8 + 2 * Cp8
    w_spat = jnp.dot(wup.astype(f32), wvr.astype(f32))               # fold conv_up
    w = jnp.zeros((R, C), f32)
    w = w.at[off_spat:off_spat + P].set(w_spat)
    w = w.at[off_qr:off_qr + 1].set(wqr.astype(f32))
    w = w.at[off_ql:off_ql + Cp].set(wql.astype(f32))
    w = w.at[off_vl:off_vl + Cp].set(wvl.astype(f32))
    w = w.astype(matmul_dtype)                                       # bf16 MXU feed

    # ---- Bt / VMEM sizing (intermediate-aware, per-chip) ----
    elt = x2.dtype.itemsize
    try:
        vmem_cap = int(pltpu.get_tpu_info().vmem_capacity_bytes)
    except Exception:
        vmem_cap = 64 << 20                       # v7x-safe fallback
    vmem_limit = min(vmem_cap * 3 // 4, 112 << 20)
    per_batch_in = (C + 1) * HW * elt             # x + map rows of the block
    per_batch_out = C * HW * elt
    per_batch_tmp = (R + 2 * Cp + 2 * C) * HW * 4  # f32 y/theta/exp/gate live set
    per_bt_cost = 2 * (per_batch_in + per_batch_out) + per_batch_tmp  # 2x = dbl-buffer
    bt_vmem = max(1, (vmem_limit * 3 // 5) // max(per_bt_cost, 1))
    bt_tgt = max(1, target_step_bytes // max(per_batch_in, 1))
    bt_mega = max(1, -(-B // 2))                  # keep >= 2 grid steps when B >= 2
    Bt = int(min(bt_vmem, bt_tgt, bt_mega, B))
    grid = (pl.cdiv(B, Bt),)                      # no divisibility requirement

    kernel = _make_ggm_kernel(Bt, C, Cp, P, HW,
                              (off_spat, off_qr, off_ql, off_vl), matmul_dtype)

    out = pl.pallas_call(
        kernel,
        out_shape=jax.ShapeDtypeStruct((B, C, HW), x.dtype),
        grid_spec=pltpu.PrefetchScalarGridSpec(
            num_scalar_prefetch=0,
            grid=grid,
            in_specs=[
                pl.BlockSpec((Bt, C, HW), lambda b: (b, 0, 0)),
                pl.BlockSpec((Bt, 1, HW), lambda b: (b, 0, 0)),
                pl.BlockSpec((R, C), lambda b: (0, 0)),
            ],
            out_specs=pl.BlockSpec((Bt, C, HW), lambda b: (b, 0, 0)),
        ),
        compiler_params=pltpu.CompilerParams(
            dimension_semantics=("parallel",),
            vmem_limit_bytes=int(vmem_limit)),
    )(x2, m2, w)

    return out.reshape(B, C, H, W)


def ggm_reference(x, mp, wqr, wvr, wup, wql, wvl):
    """Pure-JAX reference matching the PyTorch forward."""
    B, C, H, W = x.shape
    HW = H * W
    x2 = x.reshape(B, C, HW)
    m2 = mp.reshape(B, 1, HW)

    # spatial_pool
    input_x = jnp.einsum("oc,bcn->bon", wvr, x2)                 # (B, Cp, HW)
    cmask = jax.nn.softmax(jnp.einsum("oc,bcn->bon", wqr, x2), axis=2)
    context = jnp.einsum("bcn,bon->bco", input_x, cmask)         # (B, Cp, 1)
    ctx_up = jnp.einsum("pc,bco->bpo", wup, context)             # (B, P, 1)
    mask_ch = jax.nn.sigmoid(ctx_up)[..., None]                  # (B, P, 1, 1)
    out_spatial = x * mask_ch

    # channel_pool
    g_x = jnp.einsum("oc,bcn->bon", wql, x2)                     # (B, Cp, HW)
    avg_x = jnp.mean(g_x, axis=2, keepdims=True)                 # (B, Cp, 1)
    theta = jnp.einsum("oc,bcn->bon", wvl, x2) * jax.nn.sigmoid(m2)
    theta = jax.nn.softmax(theta, axis=2)
    context2 = jnp.einsum("bco,bcn->bon", avg_x, theta)          # (B, 1, HW)
    mask_sp = jax.nn.sigmoid(context2).reshape(B, 1, H, W)
    out_channel = x * mask_sp

    return out_channel + out_spatial


if __name__ == "__main__":
    key = jax.random.PRNGKey(0)
    B, inplanes, H, W = 2, 4, 16, 16
    planes = inplanes            # required for `x * mask_ch` broadcast (as in torch)
    inter = planes // 2

    k = jax.random.split(key, 8)
    x = jax.random.normal(k[0], (B, inplanes, H, W), dtype=jnp.float32)
    mp = jax.random.normal(k[1], (B, 1, H, W), dtype=jnp.float32)

    # Deterministic kaiming-normal-ish init (fan_in, relu): std = sqrt(2 / fan_in)
    def kaiming(kk, out_c, in_c):
        return jax.random.normal(kk, (out_c, in_c), dtype=jnp.float32) * jnp.sqrt(2.0 / in_c)

    wqr = kaiming(k[2], 1, inplanes)        # conv_q_right
    wvr = kaiming(k[3], inter, inplanes)    # conv_v_right
    wup = kaiming(k[4], planes, inter)      # conv_up
    wql = kaiming(k[5], inter, inplanes)    # conv_q_left
    wvl = kaiming(k[6], inter, inplanes)    # conv_v_left

    out = ggm_forward(x, mp, wqr, wvr, wup, wql, wvl)
    out = jax.block_until_ready(out)

    ref = ggm_reference(x, mp, wqr, wvr, wup, wql, wvl)
    assert out.shape == (B, inplanes, H, W)
    # bf16 MXU feed (weights + activations rounded to bf16) on a sigmoid-gating
    # module -> compare against the f32 reference at a few-percent tolerance.
    assert jnp.allclose(out, ref, atol=5e-2, rtol=5e-2), "mismatch vs reference"

    print("KERNEL_OK")
</pallas_src>

<mosaic_0001>
module attributes {stable_mosaic.version = 11 : i64} {
  func.func @kernel(%arg0: i32, %arg1: memref<1x4x256xf32, #tpu.memory_space<vmem>>, %arg2: memref<1x1x256xf32, #tpu.memory_space<vmem>>, %arg3: memref<32x4xbf16, #tpu.memory_space<vmem>>, %arg4: memref<1x4x256xf32, #tpu.memory_space<vmem>>) attributes {dimension_semantics = [#tpu.dimension_semantics<parallel>], iteration_bounds = array<i64: 2>, scalar_prefetch = 0 : i64, scratch_operands = 0 : i64, tpu.core_type = #tpu.core_type<tc>, window_params = [{transform_indices = @transform_0, window_bounds = array<i64: 1, 4, 256>}, {transform_indices = @transform_1, window_bounds = array<i64: 1, 1, 256>}, {pipeline_mode = #tpu.pipeline_mode<synchronous>, transform_indices = @transform_2, window_bounds = array<i64: 32, 4>}, {transform_indices = @transform_3, window_bounds = array<i64: 1, 4, 256>}]} {
    %c0 = arith.constant 0 : index
    %c0_0 = arith.constant 0 : index
    %0 = vector.load %arg3[%c0, %c0_0] : memref<32x4xbf16, #tpu.memory_space<vmem>>, vector<32x4xbf16>
    %c0_i32 = arith.constant 0 : i32
    %1 = arith.index_cast %c0_i32 : i32 to index
    %c0_1 = arith.constant 0 : index
    %c0_2 = arith.constant 0 : index
    %2 = vector.load %arg1[%1, %c0_1, %c0_2] : memref<1x4x256xf32, #tpu.memory_space<vmem>>, vector<1x4x256xf32>
    %3 = vector.shape_cast %2 : vector<1x4x256xf32> to vector<4x256xf32>
    %4 = arith.index_cast %c0_i32 : i32 to index
    %c0_3 = arith.constant 0 : index
    %c0_4 = arith.constant 0 : index
    %5 = vector.load %arg2[%4, %c0_3, %c0_4] : memref<1x1x256xf32, #tpu.memory_space<vmem>>, vector<1x1x256xf32>
    %6 = vector.shape_cast %5 : vector<1x1x256xf32> to vector<1x256xf32>
    %7 = arith.truncf %3 : vector<4x256xf32> to vector<4x256xbf16>
    %cst = arith.constant dense<0.000000e+00> : vector<32x256xf32>
    %8 = tpu.matmul %0, %7, %cst {dimension_numbers = #tpu.dot_dimension_numbers<[1], [0], [0], [1], [0, 0, 1, 1], [], []>} : vector<32x4xbf16>, vector<4x256xbf16>, vector<32x256xf32> -> vector<32x256xf32>
    %9 = vector.extract_strided_slice %8 {offsets = [0, 0], sizes = [4, 256], strides = [1, 1]} : vector<32x256xf32> to vector<4x256xf32>
    %10 = vector.extract_strided_slice %8 {offsets = [8, 0], sizes = [1, 256], strides = [1, 1]} : vector<32x256xf32> to vector<1x256xf32>
    %11 = vector.extract_strided_slice %8 {offsets = [16, 0], sizes = [2, 256], strides = [1, 1]} : vector<32x256xf32> to vector<2x256xf32>
    %12 = vector.extract_strided_slice %8 {offsets = [24, 0], sizes = [2, 256], strides = [1, 1]} : vector<32x256xf32> to vector<2x256xf32>
    %cst_5 = arith.constant dense<0xFF800000> : vector<1xf32>
    %13 = vector.multi_reduction <maximumf>, %10, %cst_5 [1] : vector<1x256xf32> to vector<1xf32>
    %14 = vector.shape_cast %13 : vector<1xf32> to vector<1x1xf32>
    %15 = vector.broadcast %14 : vector<1x1xf32> to vector<1x256xf32>
    %16 = arith.subf %10, %15 : vector<1x256xf32>
    %17 = math.exp %16 : vector<1x256xf32>
    %cst_6 = arith.constant dense<0.000000e+00> : vector<1xf32>
    %18 = vector.multi_reduction <add>, %17, %cst_6 [1] : vector<1x256xf32> to vector<1xf32>
    %19 = vector.shape_cast %18 : vector<1xf32> to vector<1x1xf32>
    %20 = vector.broadcast %17 : vector<1x256xf32> to vector<4x256xf32>
    %21 = arith.mulf %9, %20 : vector<4x256xf32>
    %cst_7 = arith.constant dense<0.000000e+00> : vector<4xf32>
    %22 = vector.multi_reduction <add>, %21, %cst_7 [1] : vector<4x256xf32> to vector<4xf32>
    %23 = vector.shape_cast %22 : vector<4xf32> to vector<4x1xf32>
    %24 = tpu.reciprocal %19 : vector<1x1xf32> -> vector<1x1xf32>
    %25 = vector.broadcast %24 : vector<1x1xf32> to vector<4x1xf32>
    %26 = arith.mulf %23, %25 : vector<4x1xf32>
    %cst_8 = arith.constant 0.000000e+00 : f32
    %27 = vector.broadcast %cst_8 : f32 to vector<4x1xf32>
    %28 = arith.subf %27, %26 : vector<4x1xf32>
    %29 = math.exp %28 : vector<4x1xf32>
    %cst_9 = arith.constant 1.000000e+00 : f32
    %30 = vector.broadcast %cst_9 : f32 to vector<4x1xf32>
    %31 = arith.addf %30, %29 : vector<4x1xf32>
    %32 = tpu.reciprocal %31 : vector<4x1xf32> -> vector<4x1xf32>
    %cst_10 = arith.constant dense<0.000000e+00> : vector<2xf32>
    %33 = vector.multi_reduction <add>, %11, %cst_10 [1] : vector<2x256xf32> to vector<2xf32>
    %34 = vector.shape_cast %33 : vector<2xf32> to vector<2x1xf32>
    %cst_11 = arith.constant 3.906250e-03 : f32
    %35 = vector.broadcast %cst_11 : f32 to vector<2x1xf32>
    %36 = arith.mulf %34, %35 : vector<2x1xf32>
    %cst_12 = arith.constant 0.000000e+00 : f32
    %37 = vector.broadcast %cst_12 : f32 to vector<1x256xf32>
    %38 = arith.subf %37, %6 : vector<1x256xf32>
    %39 = math.exp %38 : vector<1x256xf32>
    %cst_13 = arith.constant 1.000000e+00 : f32
    %40 = vector.broadcast %cst_13 : f32 to vector<1x256xf32>
    %41 = arith.addf %40, %39 : vector<1x256xf32>
    %42 = tpu.reciprocal %41 : vector<1x256xf32> -> vector<1x256xf32>
    %43 = vector.broadcast %42 : vector<1x256xf32> to vector<2x256xf32>
    %44 = arith.mulf %12, %43 : vector<2x256xf32>
    %cst_14 = arith.constant dense<0xFF800000> : vector<2xf32>
    %45 = vector.multi_reduction <maximumf>, %44, %cst_14 [1] : vector<2x256xf32> to vector<2xf32>
    %46 = vector.shape_cast %45 : vector<2xf32> to vector<2x1xf32>
    %47 = vector.broadcast %46 : vector<2x1xf32> to vector<2x256xf32>
    %48 = arith.subf %44, %47 : vector<2x256xf32>
    %49 = math.exp %48 : vector<2x256xf32>
    %cst_15 = arith.constant dense<0.000000e+00> : vector<2xf32>
    %50 = vector.multi_reduction <add>, %49, %cst_15 [1] : vector<2x256xf32> to vector<2xf32>
    %51 = vector.shape_cast %50 : vector<2xf32> to vector<2x1xf32>
    %52 = tpu.reciprocal %51 : vector<2x1xf32> -> vector<2x1xf32>
    %53 = arith.mulf %36, %52 : vector<2x1xf32>
    %54 = vector.broadcast %53 : vector<2x1xf32> to vector<2x256xf32>
    %55 = arith.mulf %54, %49 : vector<2x256xf32>
    %cst_16 = arith.constant dense<0.000000e+00> : vector<256xf32>
    %56 = vector.multi_reduction <add>, %55, %cst_16 [0] : vector<2x256xf32> to vector<256xf32>
    %57 = vector.shape_cast %56 : vector<256xf32> to vector<1x256xf32>
    %cst_17 = arith.constant 0.000000e+00 : f32
    %58 = vector.broadcast %cst_17 : f32 to vector<1x256xf32>
    %59 = arith.subf %58, %57 : vector<1x256xf32>
    %60 = math.exp %59 : vector<1x256xf32>
    %cst_18 = arith.constant 1.000000e+00 : f32
    %61 = vector.broadcast %cst_18 : f32 to vector<1x256xf32>
    %62 = arith.addf %61, %60 : vector<1x256xf32>
    %63 = tpu.reciprocal %62 : vector<1x256xf32> -> vector<1x256xf32>
    %64 = vector.broadcast %32 : vector<4x1xf32> to vector<4x256xf32>
    %65 = vector.broadcast %63 : vector<1x256xf32> to vector<4x256xf32>
    %66 = arith.addf %64, %65 : vector<4x256xf32>
    %67 = arith.mulf %3, %66 : vector<4x256xf32>
    %68 = arith.index_cast %c0_i32 : i32 to index
    %c0_19 = arith.constant 0 : index
    %c0_20 = arith.constant 0 : index
    %69 = vector.load %arg4[%68, %c0_19, %c0_20] : memref<1x4x256xf32, #tpu.memory_space<vmem>>, vector<1x4x256xf32>
    %70 = vector.shape_cast %69 : vector<1x4x256xf32> to vector<4x256xf32>
    %71 = vector.shape_cast %67 : vector<4x256xf32> to vector<1x4x256xf32>
    tpu.vector_store %arg4[%68, %c0_19, %c0_20], %71 {strides = array<i32>} : memref<1x4x256xf32, #tpu.memory_space<vmem>>, vector<1x4x256xf32>,
    %c1_i32 = arith.constant 1 : i32
    return
  }
  func.func @transform_0(%arg0: i32) -> (i32, i32, i32) {
    %c0_i32 = arith.constant 0 : i32
    %c0_i32_0 = arith.constant 0 : i32
    %c0_i32_1 = arith.constant 0 : i32
    return %arg0, %c0_i32, %c0_i32_0 : i32, i32, i32
  }
  func.func @transform_1(%arg0: i32) -> (i32, i32, i32) {
    %c0_i32 = arith.constant 0 : i32
    %c0_i32_0 = arith.constant 0 : i32
    %c0_i32_1 = arith.constant 0 : i32
    return %arg0, %c0_i32, %c0_i32_0 : i32, i32, i32
  }
  func.func @transform_2(%arg0: i32) -> (i32, i32) {
    %c0_i32 = arith.constant 0 : i32
    %c0_i32_0 = arith.constant 0 : i32
    %c0_i32_1 = arith.constant 0 : i32
    return %c0_i32, %c0_i32_0 : i32, i32
  }
  func.func @transform_3(%arg0: i32) -> (i32, i32, i32) {
    %c0_i32 = arith.constant 0 : i32
    %c0_i32_0 = arith.constant 0 : i32
    %c0_i32_1 = arith.constant 0 : i32
    return %arg0, %c0_i32, %c0_i32_0 : i32, i32, i32
  }
}

</mosaic_0001>

<llo_original>
// kernel: tpu_custom_call.1
$region0: #{tpu_custom_call.1}
  #allocation0 [shape = 'u32[]', space=smem, size = 0x4, offset = 0x4, fixed_abs, tag = 'smem constant byte address 0x4 - core index']
  #allocation1 [shape = 'u32[144,128]{1,0:T(1,128)}', space=vmem, size = 0x12000, scoped, tag = 'internal scratch']
  %s0 = inlined_call_operand.vmem [shape: f32[2,4,256], index: 0, kind: input, shape index: {}]
  %s1 = inlined_call_operand.vmem [shape: f32[2,1,256], index: 1, kind: input, shape index: {}]
  %s2 = inlined_call_operand.vmem [shape: bf16[32,4], index: 2, kind: input, shape index: {}]
  %s3 = inlined_call_operand.hbm [shape: f32[2,4,256], index: 3, kind: output, shape index: {}]
  %s4 = sld [smem:[#allocation0]]
  $region45: #{tpu_custom_call.1} parent=0
    _
  %s6 = ssub.s32 1, %s4
  %s7 = scalar_select 0, %s6, %s4
  $region1: #{tpu_custom_call.1} parent=0
    #allocation2 [shape = 'u8[8192]{0}', space=vmem, size = 0x2000, scoped, tag = 'output window, operand 0']
    #allocation3 [shape = 's32[2]{0}', space=sflag, size = 0x8, scoped, tag = 'scoped memory for tpu_custom_call.1']
    %8 = vsyncpa [#allocation3], 0
    %s9 = scalar_lea.sflag [#allocation3], 1
    %10 = vsyncpa %s9, 0
    loop: start=0, step=1, limit=4
    $region2: #{tpu_custom_call.1} parent=1 // loop_pre_header
      _
    $region3: #{tpu_custom_call.1} parent=1 // loop_header
      %s12 = sphi 0, %s16
      %p13 = scmp.ge.s32.totalorder %s12, 4
      %s22 = sphi 0, %s24
      %s25 = sphi 0, %s22
      %s26 = sphi 0, %s25
      %s42 = sphi 0, %s26
      %s48 = sphi 0, %s50
      %s51 = sphi 0, %s48
      %s52 = sphi 0, %s51
      %s68 = sphi 0, %s52
      %s72 = sphi 0, %s72
      %s74 = sphi 0, %s72
      %s75 = sphi 0, %s74
      %s89 = sphi 0, %s75
      %s95 = sphi 0, %s97
      %s98 = sphi 0, %s95
      %s99 = sphi 0, %s98
      %s115 = sphi 0, %s99
    $region4: #{tpu_custom_call.1} parent=1 // loop_header_branch
      %15 = sbr.rel (%p13) target = $region8
    $region5: #{tpu_custom_call.1} parent=1 // loop_body
      %s17 = ssub.s32 %s12, 1
      %s18 = ssub.s32 %s12, 2
      %s19 = sadd.s32 %s12, 1
      %s20 = ssub.s32 %s12, %s19
      %p21 = scmp.eq.s32.totalorder %s20, 0
      %s23 = sadd.s32 %s22, 1
      %s24 = scalar_select %p21, %s22, %s23
      %p27 = pneg %p21
      %p28 = scmp.eq.s32.totalorder %s12, 1
      %p29 = por %p27, %p28
      %p30 = scmp.ne.s32.totalorder %s22, %s25
      %p31 = scmp.eq.s32.totalorder %s12, 0
      %p32 = por %p30, %p31
      %p33 = scmp.ne.s32.totalorder %s22, %s25
      %p34 = scmp.eq.s32.totalorder %s17, 1
      %p35 = por %p33, %p34
      %p36 = scmp.ne.s32.totalorder %s25, %s26
      %p37 = scmp.eq.s32.totalorder %s17, 0
      %p38 = por %p36, %p37
      %p39 = scmp.ne.s32.totalorder %s25, %s26
      %p40 = scmp.eq.s32.totalorder %s18, 1
      %p41 = por %p39, %p40
      %p43 = scmp.ne.s32.totalorder %s26, %s42
      %p44 = scmp.eq.s32.totalorder %s18, 0
      %p45 = por %p43, %p44
      %s46 = ssub.s32 %s12, %s19
      %p47 = scmp.eq.s32.totalorder %s46, 0
      %s49 = sadd.s32 %s48, 1
      %s50 = scalar_select %p47, %s48, %s49
      %p53 = pneg %p47
      %p54 = scmp.eq.s32.totalorder %s12, 1
      %p55 = por %p53, %p54
      %p56 = scmp.ne.s32.totalorder %s48, %s51
      %p57 = scmp.eq.s32.totalorder %s12, 0
      %p58 = por %p56, %p57
      %p59 = scmp.ne.s32.totalorder %s48, %s51
      %p60 = scmp.eq.s32.totalorder %s17, 1
      %p61 = por %p59, %p60
      %p62 = scmp.ne.s32.totalorder %s51, %s52
      %p63 = scmp.eq.s32.totalorder %s17, 0
      %p64 = por %p62, %p63
      %p65 = scmp.ne.s32.totalorder %s51, %s52
      %p66 = scmp.eq.s32.totalorder %s18, 1
      %p67 = por %p65, %p66
      %p69 = scmp.ne.s32.totalorder %s52, %s68
      %p70 = scmp.eq.s32.totalorder %s18, 0
      %p71 = por %p69, %p70
      %s73 = sadd.s32 %s72, 1
      %p76 = scmp.eq.s32.totalorder %s12, 1
      %p77 = scmp.ne.s32.totalorder %s72, %s74
      %p78 = scmp.eq.s32.totalorder %s12, 0
      %p79 = por %p77, %p78
      %p80 = scmp.ne.s32.totalorder %s72, %s74
      %p81 = scmp.eq.s32.totalorder %s17, 1
      %p82 = por %p80, %p81
      %p83 = scmp.ne.s32.totalorder %s74, %s75
      %p84 = scmp.eq.s32.totalorder %s17, 0
      %p85 = por %p83, %p84
      %p86 = scmp.ne.s32.totalorder %s74, %s75
      %p87 = scmp.eq.s32.totalorder %s18, 1
      %p88 = por %p86, %p87
      %p90 = scmp.ne.s32.totalorder %s75, %s89
      %p91 = scmp.eq.s32.totalorder %s18, 0
      %p92 = por %p90, %p91
      %s93 = ssub.s32 %s12, %s19
      %p94 = scmp.eq.s32.totalorder %s93, 0
      %s96 = sadd.s32 %s95, 1
      %s97 = scalar_select %p94, %s95, %s96
      %p100 = pneg %p94
      %p101 = scmp.eq.s32.totalorder %s12, 1
      %p102 = por %p100, %p101
      %p103 = scmp.ne.s32.totalorder %s95, %s98
      %p104 = scmp.eq.s32.totalorder %s12, 0
      %p105 = por %p103, %p104
      %p106 = scmp.ne.s32.totalorder %s95, %s98
      %p107 = scmp.eq.s32.totalorder %s17, 1
      %p108 = por %p106, %p107
      %p109 = scmp.ne.s32.totalorder %s98, %s99
      %p110 = scmp.eq.s32.totalorder %s17, 0
      %p111 = por %p109, %p110
      %p112 = scmp.ne.s32.totalorder %s98, %s99
      %p113 = scmp.eq.s32.totalorder %s18, 1
      %p114 = por %p112, %p113
      %p116 = scmp.ne.s32.totalorder %s99, %s115
      %p117 = scmp.eq.s32.totalorder %s18, 0
      %p118 = por %p116, %p117
      %p119 = scmp.le.s32.totalorder 1, %s12
      %p120 = scmp.lt.s32.totalorder %s12, 3
      %p121 = pnand %p119, %p120
      %p122 = pneg %p121
      // Predicated region
      $region9: #{tpu_custom_call.1} parent=5 // pred_check
        _
      $region10: #{tpu_custom_call.1} parent=5 // pred_check_branch
        %124 = sbr.rel (%p121) target = $region12
      $region11: #{tpu_custom_call.1} parent=5 // pred_region
        %s125 = ssub.s32 %s12, 1
        // Predicated region
        $region13: #{tpu_custom_call.1} parent=11 // pred_check
          %p126 = pneg %p85
        $region14: #{tpu_custom_call.1} parent=11 // pred_check_branch
          %128 = sbr.rel (%p126) target = $region16
        $region15: #{tpu_custom_call.1} parent=11 // pred_region
          _
        $region16: #{tpu_custom_call.1} parent=11 // pred_fallthru
          _
      $region12: #{tpu_custom_call.1} parent=5 // pred_fallthru
        _
      %p129 = scmp.lt.s32.totalorder %s12, 2
      // Predicated region
      $region17: #{tpu_custom_call.1} parent=5 // pred_check
        %p130 = pneg %p129
      $region18: #{tpu_custom_call.1} parent=5 // pred_check_branch
        %132 = sbr.rel (%p130) target = $region20
      $region19: #{tpu_custom_call.1} parent=5 // pred_region
        // Predicated region
        $region21: #{tpu_custom_call.1} parent=19 // pred_check
          %p133 = pneg %p32
        $region22: #{tpu_custom_call.1} parent=19 // pred_check_branch
          %135 = sbr.rel (%p133) target = $region24
        $region23: #{tpu_custom_call.1} parent=19 // pred_region
          %p136 = scmp.lt.s32.totalorder %s12, 1
          %s137 = scalar_select %p136, %s12, 1
          %s138 = smul.addr %s137, 2
          %s139 = smul.addr %s138, 4
          %s140 = scalar_lea.vmem %s0, %s139
        $region24: #{tpu_custom_call.1} parent=19 // pred_fallthru
          _
        // Predicated region
        $region25: #{tpu_custom_call.1} parent=19 // pred_check
          %p141 = pneg %p58
        $region26: #{tpu_custom_call.1} parent=19 // pred_check_branch
          %143 = sbr.rel (%p141) target = $region28
        $region27: #{tpu_custom_call.1} parent=19 // pred_region
          %p144 = scmp.lt.s32.totalorder %s12, 1
          %s145 = scalar_select %p144, %s12, 1
          %s146 = smul.addr %s145, 2
          %s147 = scalar_lea.vmem %s1, %s146
        $region28: #{tpu_custom_call.1} parent=19 // pred_fallthru
          _
      $region20: #{tpu_custom_call.1} parent=5 // pred_fallthru
        _
      %p148 = scmp.le.s32.totalorder 1, %s12
      %p149 = scmp.lt.s32.totalorder %s12, 3
      %p150 = pnand %p148, %p149
      %p151 = pneg %p150
      // Predicated region
      $region29: #{tpu_custom_call.1} parent=5 // pred_check
        _
      $region30: #{tpu_custom_call.1} parent=5 // pred_check_branch
        %153 = sbr.rel (%p150) target = $region32
      $region31: #{tpu_custom_call.1} parent=5 // pred_region
        %s154 = ssub.s32 %s12, 1
        %p155 = scmp.lt.s32.totalorder %s17, 1
        %s156 = scalar_select %p155, %s17, 1
        %s157 = smul.addr %s156, 2
        %s158 = smul.addr %s157, 4
        %s159 = scalar_lea.vmem %s0, %s158
        %p160 = pneg %p38
        %p161 = pneg %p35
        %p162 = scmp.lt.s32.totalorder %s17, 1
        %s163 = scalar_select %p162, %s17, 1
        %s164 = smul.addr %s163, 2
        %s165 = scalar_lea.vmem %s1, %s164
        %p166 = pneg %p64
        %p167 = pneg %p61
        %p168 = pneg %p85
        %p169 = pneg %p82
        %p170 = pneg %p111
        %p171 = pneg %p108
        %s172 = sand.u32 %s98, 1
        %s173 = scalar_lea.sflag [#allocation3], %s172
        %s174 = sand.u32 %s98, 1
        %s175 = smul.addr %s174, 8
        %s176 = scalar_lea.vmem [#allocation2], %s175
        %p177 = scmp.lt.s32.totalorder %s17, 1
        %s178 = scalar_select %p177, %s17, 1
        %s179 = smul.addr %s178, 2
        %s180 = smul.addr %s179, 4
        %s181 = scalar_lea.vmem %s0, %s180
        %p182 = scmp.lt.s32.totalorder %s17, 1
        %s183 = scalar_select %p182, %s17, 1
        %s184 = smul.addr %s183, 2
        %s185 = scalar_lea.vmem %s1, %s184
        %v187 = vld [vmem:[%s2] sm:$0xf]
        %v188 = vld [vmem:[%s2 + $0x4] sm:$0xf]
        %v189 = vld [vmem:[%s2 + $0x8] sm:$0xf]
        %v190 = vld [vmem:[%s2 + $0xc] sm:$0xf]
        %v191 = vld [vmem:[%s181] sm:$0xff]
        %v192 = vld [vmem:[%s185] sm:$0x3]
        %v194 = vcombine.high %v191, %v191
        %v196 = vpack.c.bf16 %v191, %v191
        %v197 = vpack.c.bf16 %v194, %v194
        %v202 = vunpack.c.l.b16 %v187
        %v203 = vunpack.c.l.b16 %v188
        %v204 = vunpack.c.l.b16 %v189
        %v205 = vunpack.c.l.b16 %v190
        %v206 = vpack.c.b16 %v203, %v202
        %v207 = vpack.c.b16 %v205, %v204
        %vm208 = vcmask 31744
        %v210 = vsel %vm208, %v206, 0
        %v213 = vsel %vm208, %v207, 0
        %vm215 = vcmask 1041408
        %v217 = vsel %vm215, %v196, 0
        %v220 = vsel %vm215, %v197, 0
        %222 = vmatprep.subr.bf16.mxu0 %v220
        %223 = vmatpush1.bf16.msra.mxu0 %v217
        %224 = vmatprep.subr.bf16.mxu0 0
        %225 = vmatpush1.bf16.msra.mxu0 0
        %226 = vmatprep.subr.bf16.mxu0 0
        %227 = vmatpush1.bf16.msra.mxu0 0
        %228 = vmatprep.subr.bf16.mxu0 0
        %229 = vmatpush1.bf16.msra.mxu0 0
        %230 = vmatprep.subr.bf16.mxu0 0
        %231 = vmatpush1.bf16.msra.mxu0 0
        %232 = vmatprep.subr.bf16.mxu0 0
        %233 = vmatpush1.bf16.msra.mxu0 0
        %234 = vmatprep.subr.bf16.mxu0 0
        %235 = vmatpush1.bf16.msra.mxu0 0
        %236 = vmatprep.subr.bf16.mxu0 0
        %237 = vmatpush1.bf16.msra.mxu0 0
        %238 = vmatprep.subr.bf16.mxu0 0
        %239 = vmatpush1.bf16.msra.mxu0 0
        %240 = vmatprep.subr.bf16.mxu0 0
        %241 = vmatpush1.bf16.msra.mxu0 0
        %242 = vmatprep.subr.bf16.mxu0 0
        %243 = vmatpush1.bf16.msra.mxu0 0
        %244 = vmatprep.subr.bf16.mxu0 0
        %245 = vmatpush1.bf16.msra.mxu0 0
        %246 = vmatprep.subr.bf16.mxu0 0
        %247 = vmatpush1.bf16.msra.mxu0 0
        %248 = vmatprep.subr.bf16.mxu0 0
        %249 = vmatpush1.bf16.msra.mxu0 0
        %250 = vmatprep.subr.bf16.mxu0 0
        %251 = vmatpush1.bf16.msra.mxu0 0
        %252 = vmatprep.subr.bf16.mxu0 0
        %253 = vmatpush1.bf16.msra.mxu0 0
        %254 = vmatprep.mubr.bf16.mxu0 0
        %255 = vmatmul.mubr.bf16.gmra.mrb[0].mxu0 %v210
        %v256 = vpop.f32.mrb[0].mxu0
        %v257 = vadd.f32 0.0, %v256
        %v258 = vpop.f32.mrb[0].mxu0
        %v259 = vadd.f32 0.0, %v258
        %v260 = vpop.f32.mrb[0].mxu0
        %v261 = vadd.f32 0.0, %v260
        %v262 = vpop.f32.mrb[0].mxu0
        %v263 = vadd.f32 0.0, %v262
        %264 = vmatprep.mubr.bf16.mxu0 0
        %265 = vmatmul.mubr.bf16.gmra.mrb[0].mxu0 %v213
        %v266 = vpop.f32.mrb[0].mxu0
        %v267 = vadd.f32 0.0, %v266
        %v268 = vpop.f32.mrb[0].mxu0
        %v269 = vadd.f32 0.0, %v268
        %v270 = vpop.f32.mrb[0].mxu0
        %v271 = vadd.f32 0.0, %v270
        %v272 = vpop.f32.mrb[0].mxu0
        %v273 = vadd.f32 0.0, %v272
        %274 = vdwg.mxu0
        %vm275 = vcmask 1040384
        %v276 = vsel %vm275, %v261, -inf
        %v277 = vsel %vm275, %v263, -inf
        %v278 = vmax.f32 %v276, %v277
        %279 = vmax.xlane.f32.xlu0 %v278
        %v280 = vpop.xlane.xlu0 %279
        %v281 = vsub.f32 %v261, %v280
        %v282 = vsub.f32 %v263, %v280
        %v283 = vmul.f32 %v281, 1.442695
        %v284 = vpow.pop %v283
        %v285 = vmul.f32 %v282, 1.442695
        %v286 = vpow.pop %v285
        %v287 = vsel %vm275, %v284, 0.0
        %v288 = vsel %vm275, %v286, 0.0
        %v289 = vadd.f32 %v287, %v288
        %290 = vadd.xlane.f32.xlu0 %v289
        %v291 = vpop.xlane.xlu0 %290
        %v292 = vlaneseq
        %v293 = vshrl.u32 %v292, 7
        %v294 = vsub.s32 0, %v293
        %v295 = vrot.slane %v284, %v294
        %v296 = vlaneseq
        %v297 = vshrl.u32 %v296, 7
        %v298 = vsub.s32 0, %v297
        %v299 = vrot.slane %v286, %v298
        %v300 = vmul.f32 %v257, %v295
        %v301 = vmul.f32 %v259, %v299
        %vm302 = vcmask 1043456
        %v303 = vsel %vm302, %v300, 0.0
        %v304 = vsel %vm302, %v301, 0.0
        %v305 = vadd.f32 %v303, %v304
        %306 = vadd.xlane.f32.xlu0 %v305
        %v307 = vpop.xlane.xlu0 %306
        %v308 = vrcp.pop %v291
        %v309 = vlaneseq
        %v310 = vshrl.u32 %v309, 7
        %v311 = vsub.s32 0, %v310
        %v312 = vrot.slane %v308, %v311
        %v313 = vmul.f32 %v307, %v312
        %v314 = vsub.f32 0.0, %v313
        %v315 = vmul.f32 %v314, 1.442695
        %v316 = vpow.pop %v315
        %v317 = vadd.f32 %v316, 1.0
        %v318 = vrcp.pop %v317
        %v319 = vsel %vm215, %v267, 0.0
        %v320 = vsel %vm215, %v269, 0.0
        %v321 = vadd.f32 %v319, %v320
        %322 = vadd.xlane.f32.xlu0 %v321
        %v323 = vpop.xlane.xlu0 %322
        %v324 = vmul.f32 %v323, 0.00390625
        %v325 = vsub.f32 0.0, %v192
        %v326 = vmul.f32 %v325, 1.442695
        %v327 = vpow.pop %v326
        %v328 = vadd.f32 %v327, 1.0
        %v329 = vrcp.pop %v328
        %v331 = vlaneseq
        %v332 = vshrl.u32 %v331, 7
        %v333 = vsub.s32 0, %v332
        %v334 = vrot.slane %v329, %v333
        %v335 = vlaneseq
        %v336 = vshrl.u32 %v335, 7
        %v337 = vsub.s32 1, %v336
        %v338 = vrot.slane %v329, %v337
        %v341 = vmul.f32 %v271, %v334
        %v342 = vmul.f32 %v273, %v338
        %v343 = vsel %vm215, %v341, -inf
        %v344 = vsel %vm215, %v342, -inf
        %v345 = vmax.f32 %v343, %v344
        %346 = vmax.xlane.f32.xlu0 %v345
        %v347 = vpop.xlane.xlu0 %346
        %v348 = vsub.f32 %v341, %v347
        %v349 = vsub.f32 %v342, %v347
        %v350 = vmul.f32 %v348, 1.442695
        %v351 = vpow.pop %v350
        %v352 = vmul.f32 %v349, 1.442695
        %v353 = vpow.pop %v352
        %v354 = vsel %vm215, %v351, 0.0
        %v355 = vsel %vm215, %v353, 0.0
        %v356 = vadd.f32 %v354, %v355
        %357 = vadd.xlane.f32.xlu0 %v356
        %v358 = vpop.xlane.xlu0 %357
        %v359 = vrcp.pop %v358
        %v360 = vmul.f32 %v324, %v359
        %v361 = vmul.f32 %v360, %v351
        %v362 = vmul.f32 %v360, %v353
        %v363 = vsel %vm215, %v361, 0.0
        %v364 = vrot.slane %v363, 4
        %v365 = vadd.f32 %v363, %v364
        %v366 = vrot.slane %v365, 2
        %v367 = vadd.f32 %v365, %v366
        %v368 = vrot.slane %v367, 1
        %v369 = vadd.f32 %v367, %v368
        %v370 = vsel %vm215, %v362, 0.0
        %v371 = vrot.slane %v370, 4
        %v372 = vadd.f32 %v370, %v371
        %v373 = vrot.slane %v372, 2
        %v374 = vadd.f32 %v372, %v373
        %v375 = vrot.slane %v374, 1
        %v376 = vadd.f32 %v374, %v375
        %v377 = vsub.f32 0.0, %v369
        %v378 = vsub.f32 0.0, %v376
        %v379 = vmul.f32 %v377, 1.442695
        %v380 = vpow.pop %v379
        %v381 = vmul.f32 %v378, 1.442695
        %v382 = vpow.pop %v381
        %v383 = vadd.f32 %v380, 1.0
        %v384 = vadd.f32 %v382, 1.0
        %v385 = vrcp.pop %v383
        %v386 = vrcp.pop %v384
        %v387 = vadd.f32 %v318, %v385
        %v388 = vadd.f32 %v318, %v386
        %v391 = vcombine.low %v387, %v388
        %v393 = vmul.f32 %v191, %v391
        %394 = vst [vmem:[%s176] sm:$0xff] %v393
        %s395 = sand.u32 %s98, 1
        %s396 = scalar_lea.sflag [#allocation3], %s395
        %s397 = sand.u32 %s98, 1
        %s398 = smul.addr %s397, 8
        %s399 = scalar_lea.vmem [#allocation2], %s398
        // Predicated region
        $region33: #{tpu_custom_call.1} parent=31 // pred_check
          %p400 = pneg %p108
        $region34: #{tpu_custom_call.1} parent=31 // pred_check_branch
          %402 = sbr.rel (%p400) target = $region36
        $region35: #{tpu_custom_call.1} parent=31 // pred_region
          %s404 = ssub.s32 128, 128
          %405 = vsyncadd %s396, %s404
          %s406 = smul.addr %s17, 2
          %s407 = smul.addr %s406, 64
          %s408 = scalar_lea.hbm %s3, %s407
          %s410 = sshll.u32 %s399, 4
          %s411 = int_to_ptr.vmem [resolvable:$true] %s410
          %413 = dma.vmem_to_hbm [thread:$0]  %s411, 128, %s408, %s396
        $region36: #{tpu_custom_call.1} parent=31 // pred_fallthru
          _
      $region32: #{tpu_custom_call.1} parent=5 // pred_fallthru
        _
      %p414 = scmp.le.s32.totalorder 2, %s12
      // Predicated region
      $region37: #{tpu_custom_call.1} parent=5 // pred_check
        %p415 = pneg %p414
      $region38: #{tpu_custom_call.1} parent=5 // pred_check_branch
        %417 = sbr.rel (%p415) target = $region40
      $region39: #{tpu_custom_call.1} parent=5 // pred_region
        %s418 = ssub.s32 %s12, 2
        // Predicated region
        $region41: #{tpu_custom_call.1} parent=39 // pred_check
          %p419 = pneg %p114
        $region42: #{tpu_custom_call.1} parent=39 // pred_check_branch
          %421 = sbr.rel (%p419) target = $region44
        $region43: #{tpu_custom_call.1} parent=39 // pred_region
          %s422 = sand.u32 %s99, 1
          %s423 = scalar_lea.sflag [#allocation3], %s422
          %s424 = sand.u32 %s99, 1
          %s425 = smul.addr %s424, 8
          %s426 = scalar_lea.vmem [#allocation2], %s425
          %427 = dma.done %s423, 128
        $region44: #{tpu_custom_call.1} parent=39 // pred_fallthru
          _
      $region40: #{tpu_custom_call.1} parent=5 // pred_fallthru
        _
    $region6: #{tpu_custom_call.1} parent=1 // loop_footer
      %s16 = sadd.s32 1, %s12
    $region7: #{tpu_custom_call.1} parent=1 // loop_footer_branch
      %11 = sbr.rel target = $region3
    $region8: #{tpu_custom_call.1} parent=1 // loop_exit
      _
    %428 = vsyncpa [#allocation3], 1
    %s429 = scalar_lea.sflag [#allocation3], 1
    %430 = vsyncpa %s429, 1

</llo_original>
